<compile_context>
chip_gen: v6e
topology: v6e:2x2x1
jax: 0.10.0
libtpu: 0.0.40
codegen_flags: <defaults>
</compile_context>

<pallas_src>
import functools

import jax
import jax.numpy as jnp
from jax.experimental import pallas as pl
from jax.experimental.pallas import tpu as pltpu


def _lora_group_norm_kernel(x_ref, w_ref, b_ref, o_ref, *, eps, inv_n):
    # x_ref: (cg, HW) block = one group of one sample.
    # w_ref, b_ref: (cg, 1) f32, already combined with the LoRA deltas.
    x = x_ref[...].astype(jnp.float32)

    # One-pass statistics (biased variance, matching F.group_norm), all in f32.
    s = jnp.sum(x)
    sq = jnp.sum(x * x)
    mean = s * inv_n
    var = jnp.maximum(sq * inv_n - mean * mean, 0.0)   # clamp: cancellation safety
    inv = jax.lax.rsqrt(var + eps)

    scale = w_ref[...] * inv                 # (cg, 1)
    shift = b_ref[...] - mean * scale        # (cg, 1)
    o_ref[...] = (x * scale + shift).astype(o_ref.dtype)


def lora_group_norm(x, weight, bias, lora_weight, lora_bias, *,
                    num_groups, eps=1e-5):
    """x: (N, C, H, W) -> (N, C, H, W), same dtype as input."""
    N, C, H, W = x.shape
    G = num_groups
    assert C % G == 0, f"num_channels ({C}) must be divisible by num_groups ({G})"
    cg = C // G
    HW = H * W

    # (N, G, cg, HW): group axis is a grid axis, no in-kernel reshapes needed.
    x4 = x.reshape(N, G, cg, HW)

    # Pre-combine affine params once, in f32, sublane-aligned: (G, cg, 1).
    wc = (weight.astype(jnp.float32) + lora_weight.astype(jnp.float32)).reshape(G, cg, 1)
    bc = (bias.astype(jnp.float32) + lora_bias.astype(jnp.float32)).reshape(G, cg, 1)

    kernel = functools.partial(_lora_group_norm_kernel,
                               eps=float(eps), inv_n=1.0 / float(cg * HW))

    # VMEM budget: in + out blocks (double-buffered) + f32 upcast/temporaries + margin.
    itemsize = jnp.dtype(x.dtype).itemsize
    block_bytes = cg * HW * itemsize
    f32_block = cg * HW * 4
    vmem_limit = 2 * 2 * block_bytes + 2 * f32_block + (1 << 20)
    vmem_limit = int(min(max(vmem_limit, 4 * 1024 * 1024), 100 * 1024 * 1024))

    out4 = pl.pallas_call(
        kernel,
        out_shape=jax.ShapeDtypeStruct((N, G, cg, HW), x.dtype),
        grid_spec=pltpu.PrefetchScalarGridSpec(
            num_scalar_prefetch=0,
            grid=(N, G),
            in_specs=[
                # x block: one (cg, HW) group; leading N, G dims squeezed out.
                pl.BlockSpec((None, None, cg, HW), lambda n, g: (n, g, 0, 0)),
                # Combined weight / bias: (cg, 1) per group, selected by g.
                pl.BlockSpec((None, cg, 1), lambda n, g: (g, 0, 0)),
                pl.BlockSpec((None, cg, 1), lambda n, g: (g, 0, 0)),
            ],
            out_specs=pl.BlockSpec((None, None, cg, HW), lambda n, g: (n, g, 0, 0)),
        ),
        compiler_params=pltpu.CompilerParams(
            dimension_semantics=("parallel", "parallel"),
            vmem_limit_bytes=vmem_limit,
        ),
    )(x4, wc, bc)

    return out4.reshape(N, C, H, W)


def reference_lora_group_norm(x, weight, bias, lora_weight, lora_bias, *,
                              num_groups, eps=1e-5):
    N, C, H, W = x.shape
    G = num_groups
    xf = x.astype(jnp.float32).reshape(N, G, (C // G) * H * W)
    mean = jnp.mean(xf, axis=-1, keepdims=True)
    var = jnp.mean((xf - mean) ** 2, axis=-1, keepdims=True)
    xn = ((xf - mean) * jax.lax.rsqrt(var + eps)).reshape(N, C, H, W)
    w = (weight.astype(jnp.float32) + lora_weight).reshape(1, C, 1, 1)
    b = (bias.astype(jnp.float32) + lora_bias).reshape(1, C, 1, 1)
    return (xn * w + b).astype(x.dtype)


if __name__ == "__main__":
    key = jax.random.PRNGKey(0)
    k_x, k_w, k_b, k_lw = jax.random.split(key, 4)

    N, C, H, W = 2, 4, 16, 16
    num_groups = 2
    eps = 1e-5

    x = jax.random.normal(k_x, (N, C, H, W), dtype=jnp.float32)

    # Deterministic parameter init (module __init__ shapes):
    weight = jax.random.normal(k_w, (C,), dtype=jnp.float32)       # GroupNorm weight
    bias = jax.random.normal(k_b, (C,), dtype=jnp.float32)         # GroupNorm bias
    lora_weight = jax.random.normal(k_lw, (C,), dtype=jnp.float32) * 0.02
    lora_bias = jnp.zeros((C,), dtype=jnp.float32)

    out = lora_group_norm(x, weight, bias, lora_weight, lora_bias,
                          num_groups=num_groups, eps=eps)
    out = jax.block_until_ready(out)

    ref = reference_lora_group_norm(x, weight, bias, lora_weight, lora_bias,
                                    num_groups=num_groups, eps=eps)
    assert out.shape == (N, C, H, W)
    assert out.dtype == x.dtype
    assert jnp.allclose(out, ref, atol=1e-4, rtol=1e-5)

    print("KERNEL_OK")
</pallas_src>

<mosaic_0001>
module attributes {stable_mosaic.version = 11 : i64} {
  func.func @_lora_group_norm_kernel(%arg0: i32, %arg1: i32, %arg2: memref<1x1x2x256xf32, #tpu.memory_space<vmem>>, %arg3: memref<1x2x1xf32, #tpu.memory_space<vmem>>, %arg4: memref<1x2x1xf32, #tpu.memory_space<vmem>>, %arg5: memref<1x1x2x256xf32, #tpu.memory_space<vmem>>) attributes {dimension_semantics = [#tpu.dimension_semantics<parallel>, #tpu.dimension_semantics<parallel>], iteration_bounds = array<i64: 2, 2>, scalar_prefetch = 0 : i64, scratch_operands = 0 : i64, tpu.core_type = #tpu.core_type<tc>, window_params = [{transform_indices = @transform_0, window_bounds = array<i64: 1, 1, 2, 256>}, {transform_indices = @transform_1, window_bounds = array<i64: 1, 2, 1>}, {transform_indices = @transform_2, window_bounds = array<i64: 1, 2, 1>}, {transform_indices = @transform_3, window_bounds = array<i64: 1, 1, 2, 256>}]} {
    %c0 = arith.constant 0 : index
    %c0_0 = arith.constant 0 : index
    %c0_1 = arith.constant 0 : index
    %c0_2 = arith.constant 0 : index
    %0 = vector.load %arg2[%c0, %c0_0, %c0_1, %c0_2] : memref<1x1x2x256xf32, #tpu.memory_space<vmem>>, vector<1x1x2x256xf32>
    %1 = vector.shape_cast %0 : vector<1x1x2x256xf32> to vector<2x256xf32>
    %2 = vector.shape_cast %1 : vector<2x256xf32> to vector<1x2x256xf32>
    %cst = arith.constant dense<0.000000e+00> : vector<1xf32>
    %3 = vector.multi_reduction <add>, %2, %cst [1, 2] : vector<1x2x256xf32> to vector<1xf32>
    %4 = vector.shape_cast %3 : vector<1xf32> to vector<1x1x1xf32>
    %5 = vector.extract %4[0, 0, 0] : f32 from vector<1x1x1xf32>
    %6 = arith.mulf %1, %1 : vector<2x256xf32>
    %7 = vector.shape_cast %6 : vector<2x256xf32> to vector<1x2x256xf32>
    %cst_3 = arith.constant dense<0.000000e+00> : vector<1xf32>
    %8 = vector.multi_reduction <add>, %7, %cst_3 [1, 2] : vector<1x2x256xf32> to vector<1xf32>
    %9 = vector.shape_cast %8 : vector<1xf32> to vector<1x1x1xf32>
    %10 = vector.extract %9[0, 0, 0] : f32 from vector<1x1x1xf32>
    %cst_4 = arith.constant 0.001953125 : f32
    %11 = arith.mulf %5, %cst_4 : f32
    %cst_5 = arith.constant 0.001953125 : f32
    %12 = arith.mulf %10, %cst_5 : f32
    %13 = arith.mulf %11, %11 : f32
    %14 = arith.subf %12, %13 : f32
    %cst_6 = arith.constant 0.000000e+00 : f32
    %15 = arith.maximumf %14, %cst_6 : f32
    %cst_7 = arith.constant 9.99999974E-6 : f32
    %16 = arith.addf %15, %cst_7 : f32
    %17 = math.rsqrt %16 : f32
    %c0_8 = arith.constant 0 : index
    %c0_9 = arith.constant 0 : index
    %c0_10 = arith.constant 0 : index
    %18 = vector.load %arg3[%c0_8, %c0_9, %c0_10] : memref<1x2x1xf32, #tpu.memory_space<vmem>>, vector<1x2x1xf32>
    %19 = vector.shape_cast %18 : vector<1x2x1xf32> to vector<2x1xf32>
    %20 = vector.broadcast %17 : f32 to vector<2x1xf32>
    %21 = arith.mulf %19, %20 : vector<2x1xf32>
    %c0_11 = arith.constant 0 : index
    %c0_12 = arith.constant 0 : index
    %c0_13 = arith.constant 0 : index
    %22 = vector.load %arg4[%c0_11, %c0_12, %c0_13] : memref<1x2x1xf32, #tpu.memory_space<vmem>>, vector<1x2x1xf32>
    %23 = vector.shape_cast %22 : vector<1x2x1xf32> to vector<2x1xf32>
    %24 = vector.broadcast %11 : f32 to vector<2x1xf32>
    %25 = arith.mulf %24, %21 : vector<2x1xf32>
    %26 = arith.subf %23, %25 : vector<2x1xf32>
    %27 = vector.broadcast %21 : vector<2x1xf32> to vector<2x256xf32>
    %28 = arith.mulf %1, %27 : vector<2x256xf32>
    %29 = vector.broadcast %26 : vector<2x1xf32> to vector<2x256xf32>
    %30 = arith.addf %28, %29 : vector<2x256xf32>
    %c0_14 = arith.constant 0 : index
    %c0_15 = arith.constant 0 : index
    %c0_16 = arith.constant 0 : index
    %c0_17 = arith.constant 0 : index
    %31 = vector.load %arg5[%c0_14, %c0_15, %c0_16, %c0_17] : memref<1x1x2x256xf32, #tpu.memory_space<vmem>>, vector<1x1x2x256xf32>
    %32 = vector.shape_cast %31 : vector<1x1x2x256xf32> to vector<2x256xf32>
    %33 = vector.shape_cast %30 : vector<2x256xf32> to vector<1x1x2x256xf32>
    tpu.vector_store %arg5[%c0_14, %c0_15, %c0_16, %c0_17], %33 {strides = array<i32>} : memref<1x1x2x256xf32, #tpu.memory_space<vmem>>, vector<1x1x2x256xf32>,
    return
  }
  func.func @transform_0(%arg0: i32, %arg1: i32) -> (i32, i32, i32, i32) {
    %c0_i32 = arith.constant 0 : i32
    %c0_i32_0 = arith.constant 0 : i32
    %c0_i32_1 = arith.constant 0 : i32
    return %arg0, %arg1, %c0_i32, %c0_i32_0 : i32, i32, i32, i32
  }
  func.func @transform_1(%arg0: i32, %arg1: i32) -> (i32, i32, i32) {
    %c0_i32 = arith.constant 0 : i32
    %c0_i32_0 = arith.constant 0 : i32
    %c0_i32_1 = arith.constant 0 : i32
    return %arg1, %c0_i32, %c0_i32_0 : i32, i32, i32
  }
  func.func @transform_2(%arg0: i32, %arg1: i32) -> (i32, i32, i32) {
    %c0_i32 = arith.constant 0 : i32
    %c0_i32_0 = arith.constant 0 : i32
    %c0_i32_1 = arith.constant 0 : i32
    return %arg1, %c0_i32, %c0_i32_0 : i32, i32, i32
  }
  func.func @transform_3(%arg0: i32, %arg1: i32) -> (i32, i32, i32, i32) {
    %c0_i32 = arith.constant 0 : i32
    %c0_i32_0 = arith.constant 0 : i32
    %c0_i32_1 = arith.constant 0 : i32
    return %arg0, %arg1, %c0_i32, %c0_i32_0 : i32, i32, i32, i32
  }
}

</mosaic_0001>

<llo_original>
// kernel: tpu_custom_call.1
$region0: #{tpu_custom_call.1}
  #allocation0 [shape = 'u32[]', space=smem, size = 0x4, offset = 0x4, fixed_abs, tag = 'smem constant byte address 0x4 - core index']
  #allocation1 [shape = 'u32[144,128]{1,0:T(1,128)}', space=vmem, size = 0x12000, scoped, tag = 'internal scratch']
  %s0 = inlined_call_operand.hbm [shape: f32[2,2,2,256], index: 0, kind: input, shape index: {}]
  %s1 = inlined_call_operand.vmem [shape: f32[2,2,1], index: 1, kind: input, shape index: {}]
  %s2 = inlined_call_operand.vmem [shape: f32[2,2,1], index: 2, kind: input, shape index: {}]
  %s3 = inlined_call_operand.hbm [shape: f32[2,2,2,256], index: 3, kind: output, shape index: {}]
  %s4 = sld [smem:[#allocation0]]
  $region49: #{tpu_custom_call.1} parent=0
    _
  %s6 = ssub.s32 1, %s4
  %s7 = scalar_select 0, %s6, %s4
  $region1: #{tpu_custom_call.1} parent=0
    #allocation2 [shape = 'u8[4096]{0}', space=vmem, size = 0x1000, scoped, tag = 'input window, operand 0']
    #allocation3 [shape = 's32[2]{0}', space=sflag, size = 0x8, scoped, tag = 'scoped memory for tpu_custom_call.1']
    #allocation4 [shape = 's32[2]{0}', space=sflag, size = 0x8, scoped, tag = 'scoped memory for tpu_custom_call.1']
    #allocation5 [shape = 'u8[4096]{0}', space=vmem, size = 0x1000, scoped, tag = 'output window, operand 0']
    %8 = vsyncpa [#allocation3], 0
    %s9 = scalar_lea.sflag [#allocation3], 1
    %10 = vsyncpa %s9, 0
    %11 = vsyncpa [#allocation4], 0
    %s12 = scalar_lea.sflag [#allocation4], 1
    %13 = vsyncpa %s12, 0
    loop: start=0, step=1, limit=6
    $region2: #{tpu_custom_call.1} parent=1 // loop_pre_header
      _
    $region3: #{tpu_custom_call.1} parent=1 // loop_header
      %s15 = sphi 0, %s19
      %p16 = scmp.ge.s32.totalorder %s15, 6
      %s22 = sphi 0, %s34
      %s23 = sphi 0, %s30
      %s24 = sphi 0, %s22
      %s25 = sphi 0, %s23
      %s26 = sphi 0, %s24
      %s27 = sphi 0, %s25
      %s39 = sphi 0, %s41
      %s42 = sphi 0, %s39
      %s43 = sphi 0, %s42
      %s59 = sphi 0, %s43
      %s65 = sphi 0, %s67
      %s68 = sphi 0, %s65
      %s69 = sphi 0, %s68
      %s85 = sphi 0, %s69
      %s91 = sphi 0, %s93
      %s94 = sphi 0, %s91
      %s95 = sphi 0, %s94
      %s111 = sphi 0, %s95
      %s119 = sphi 0, %s121
      %s122 = sphi 0, %s119
      %s123 = sphi 0, %s122
      %s139 = sphi 0, %s123
    $region4: #{tpu_custom_call.1} parent=1 // loop_header_branch
      %18 = sbr.rel (%p16) target = $region8
    $region5: #{tpu_custom_call.1} parent=1 // loop_body
      %s20 = ssub.s32 %s15, 1
      %s21 = ssub.s32 %s15, 2
      %s28 = sadd.s32 1, %s23
      %p29 = scmp.ge.s32.totalorder %s28, 2
      %s30 = scalar_select %p29, 0, %s28
      %s31 = sadd.s32 1, %s22
      %s32 = scalar_select %p29, %s31, %s22
      %p33 = scmp.ge.s32.totalorder %s32, 2
      %s34 = scalar_select %p33, 0, %s32
      %s35 = ssub.s32 %s22, %s34
      %s36 = ssub.s32 %s23, %s30
      %s37 = sor.u32 %s35, %s36
      %p38 = scmp.eq.s32.totalorder %s37, 0
      %s40 = sadd.s32 %s39, 1
      %s41 = scalar_select %p38, %s39, %s40
      %p44 = pneg %p38
      %p45 = scmp.eq.s32.totalorder %s15, 3
      %p46 = por %p44, %p45
      %p47 = scmp.ne.s32.totalorder %s39, %s42
      %p48 = scmp.eq.s32.totalorder %s15, 0
      %p49 = por %p47, %p48
      %p50 = scmp.ne.s32.totalorder %s39, %s42
      %p51 = scmp.eq.s32.totalorder %s20, 3
      %p52 = por %p50, %p51
      %p53 = scmp.ne.s32.totalorder %s42, %s43
      %p54 = scmp.eq.s32.totalorder %s20, 0
      %p55 = por %p53, %p54
      %p56 = scmp.ne.s32.totalorder %s42, %s43
      %p57 = scmp.eq.s32.totalorder %s21, 3
      %p58 = por %p56, %p57
      %p60 = scmp.ne.s32.totalorder %s43, %s59
      %p61 = scmp.eq.s32.totalorder %s21, 0
      %p62 = por %p60, %p61
      %s63 = ssub.s32 %s23, %s30
      %p64 = scmp.eq.s32.totalorder %s63, 0
      %s66 = sadd.s32 %s65, 1
      %s67 = scalar_select %p64, %s65, %s66
      %p70 = pneg %p64
      %p71 = scmp.eq.s32.totalorder %s15, 3
      %p72 = por %p70, %p71
      %p73 = scmp.ne.s32.totalorder %s65, %s68
      %p74 = scmp.eq.s32.totalorder %s15, 0
      %p75 = por %p73, %p74
      %p76 = scmp.ne.s32.totalorder %s65, %s68
      %p77 = scmp.eq.s32.totalorder %s20, 3
      %p78 = por %p76, %p77
      %p79 = scmp.ne.s32.totalorder %s68, %s69
      %p80 = scmp.eq.s32.totalorder %s20, 0
      %p81 = por %p79, %p80
      %p82 = scmp.ne.s32.totalorder %s68, %s69
      %p83 = scmp.eq.s32.totalorder %s21, 3
      %p84 = por %p82, %p83
      %p86 = scmp.ne.s32.totalorder %s69, %s85
      %p87 = scmp.eq.s32.totalorder %s21, 0
      %p88 = por %p86, %p87
      %s89 = ssub.s32 %s23, %s30
      %p90 = scmp.eq.s32.totalorder %s89, 0
      %s92 = sadd.s32 %s91, 1
      %s93 = scalar_select %p90, %s91, %s92
      %p96 = pneg %p90
      %p97 = scmp.eq.s32.totalorder %s15, 3
      %p98 = por %p96, %p97
      %p99 = scmp.ne.s32.totalorder %s91, %s94
      %p100 = scmp.eq.s32.totalorder %s15, 0
      %p101 = por %p99, %p100
      %p102 = scmp.ne.s32.totalorder %s91, %s94
      %p103 = scmp.eq.s32.totalorder %s20, 3
      %p104 = por %p102, %p103
      %p105 = scmp.ne.s32.totalorder %s94, %s95
      %p106 = scmp.eq.s32.totalorder %s20, 0
      %p107 = por %p105, %p106
      %p108 = scmp.ne.s32.totalorder %s94, %s95
      %p109 = scmp.eq.s32.totalorder %s21, 3
      %p110 = por %p108, %p109
      %p112 = scmp.ne.s32.totalorder %s95, %s111
      %p113 = scmp.eq.s32.totalorder %s21, 0
      %p114 = por %p112, %p113
      %s115 = ssub.s32 %s22, %s34
      %s116 = ssub.s32 %s23, %s30
      %s117 = sor.u32 %s115, %s116
      %p118 = scmp.eq.s32.totalorder %s117, 0
      %s120 = sadd.s32 %s119, 1
      %s121 = scalar_select %p118, %s119, %s120
      %p124 = pneg %p118
      %p125 = scmp.eq.s32.totalorder %s15, 3
      %p126 = por %p124, %p125
      %p127 = scmp.ne.s32.totalorder %s119, %s122
      %p128 = scmp.eq.s32.totalorder %s15, 0
      %p129 = por %p127, %p128
      %p130 = scmp.ne.s32.totalorder %s119, %s122
      %p131 = scmp.eq.s32.totalorder %s20, 3
      %p132 = por %p130, %p131
      %p133 = scmp.ne.s32.totalorder %s122, %s123
      %p134 = scmp.eq.s32.totalorder %s20, 0
      %p135 = por %p133, %p134
      %p136 = scmp.ne.s32.totalorder %s122, %s123
      %p137 = scmp.eq.s32.totalorder %s21, 3
      %p138 = por %p136, %p137
      %p140 = scmp.ne.s32.totalorder %s123, %s139
      %p141 = scmp.eq.s32.totalorder %s21, 0
      %p142 = por %p140, %p141
      %p143 = scmp.le.s32.totalorder 1, %s15
      %p144 = scmp.lt.s32.totalorder %s15, 5
      %p145 = pnand %p143, %p144
      %p146 = pneg %p145
      // Predicated region
      $region9: #{tpu_custom_call.1} parent=5 // pred_check
        _
      $region10: #{tpu_custom_call.1} parent=5 // pred_check_branch
        %148 = sbr.rel (%p145) target = $region12
      $region11: #{tpu_custom_call.1} parent=5 // pred_region
        %s149 = ssub.s32 %s15, 1
      $region12: #{tpu_custom_call.1} parent=5 // pred_fallthru
        _
      %p150 = scmp.lt.s32.totalorder %s15, 4
      // Predicated region
      $region13: #{tpu_custom_call.1} parent=5 // pred_check
        %p151 = pneg %p150
      $region14: #{tpu_custom_call.1} parent=5 // pred_check_branch
        %153 = sbr.rel (%p151) target = $region16
      $region15: #{tpu_custom_call.1} parent=5 // pred_region
        // Predicated region
        $region17: #{tpu_custom_call.1} parent=15 // pred_check
          %p154 = pneg %p49
        $region18: #{tpu_custom_call.1} parent=15 // pred_check_branch
          %156 = sbr.rel (%p154) target = $region20
        $region19: #{tpu_custom_call.1} parent=15 // pred_region
          %s157 = sand.u32 %s39, 1
          %s158 = scalar_lea.sflag [#allocation3], %s157
          %s159 = sand.u32 %s39, 1
          %s160 = smul.addr %s159, 4
          %s161 = scalar_lea.vmem [#allocation2], %s160
          %s163 = ssub.s32 64, 64
          %164 = vsyncadd %s158, %s163
          %s165 = smul.addr %s23, 2
          %s166 = smul.addr %s22, 4
          %s167 = sadd.s32 %s165, %s166
          %s168 = smul.addr %s167, 32
          %s169 = scalar_lea.hbm %s0, %s168
          %s171 = sshll.u32 %s161, 4
          %s172 = int_to_ptr.vmem [resolvable:$true] %s171
          %174 = dma.hbm_to_vmem [thread:$0]  %s169, 64, %s172, %s158
        $region20: #{tpu_custom_call.1} parent=15 // pred_fallthru
          _
        // Predicated region
        $region21: #{tpu_custom_call.1} parent=15 // pred_check
          %p175 = pneg %p75
        $region22: #{tpu_custom_call.1} parent=15 // pred_check_branch
          %177 = sbr.rel (%p175) target = $region24
        $region23: #{tpu_custom_call.1} parent=15 // pred_region
          %p178 = scmp.lt.s32.totalorder %s23, 1
          %s179 = scalar_select %p178, %s23, 1
          %s180 = smul.addr %s179, 2
          %s181 = scalar_lea.vmem %s1, %s180
        $region24: #{tpu_custom_call.1} parent=15 // pred_fallthru
          _
        // Predicated region
        $region25: #{tpu_custom_call.1} parent=15 // pred_check
          %p182 = pneg %p101
        $region26: #{tpu_custom_call.1} parent=15 // pred_check_branch
          %184 = sbr.rel (%p182) target = $region28
        $region27: #{tpu_custom_call.1} parent=15 // pred_region
          %p185 = scmp.lt.s32.totalorder %s23, 1
          %s186 = scalar_select %p185, %s23, 1
          %s187 = smul.addr %s186, 2
          %s188 = scalar_lea.vmem %s2, %s187
        $region28: #{tpu_custom_call.1} parent=15 // pred_fallthru
          _
      $region16: #{tpu_custom_call.1} parent=5 // pred_fallthru
        _
      %p189 = scmp.le.s32.totalorder 1, %s15
      %p190 = scmp.lt.s32.totalorder %s15, 5
      %p191 = pnand %p189, %p190
      %p192 = pneg %p191
      // Predicated region
      $region29: #{tpu_custom_call.1} parent=5 // pred_check
        _
      $region30: #{tpu_custom_call.1} parent=5 // pred_check_branch
        %194 = sbr.rel (%p191) target = $region32
      $region31: #{tpu_custom_call.1} parent=5 // pred_region
        %s195 = ssub.s32 %s15, 1
        %s196 = sand.u32 %s42, 1
        %s197 = scalar_lea.sflag [#allocation3], %s196
        %s198 = sand.u32 %s42, 1
        %s199 = smul.addr %s198, 4
        %s200 = scalar_lea.vmem [#allocation2], %s199
        // Predicated region
        $region33: #{tpu_custom_call.1} parent=31 // pred_check
          %p201 = pneg %p55
        $region34: #{tpu_custom_call.1} parent=31 // pred_check_branch
          %203 = sbr.rel (%p201) target = $region36
        $region35: #{tpu_custom_call.1} parent=31 // pred_region
          %204 = dma.done %s197, 64
        $region36: #{tpu_custom_call.1} parent=31 // pred_fallthru
          _
        %s205 = sand.u32 %s42, 1
        %s206 = scalar_lea.sflag [#allocation3], %s205
        %s207 = sand.u32 %s42, 1
        %s208 = smul.addr %s207, 4
        %s209 = scalar_lea.vmem [#allocation2], %s208
        %p210 = pneg %p55
        %p211 = pneg %p52
        %p212 = scmp.lt.s32.totalorder %s25, 1
        %s213 = scalar_select %p212, %s25, 1
        %s214 = smul.addr %s213, 2
        %s215 = scalar_lea.vmem %s1, %s214
        %p216 = pneg %p81
        %p217 = pneg %p78
        %p218 = scmp.lt.s32.totalorder %s25, 1
        %s219 = scalar_select %p218, %s25, 1
        %s220 = smul.addr %s219, 2
        %s221 = scalar_lea.vmem %s2, %s220
        %p222 = pneg %p107
        %p223 = pneg %p104
        %p224 = pneg %p135
        %p225 = pneg %p132
        %s226 = sand.u32 %s122, 1
        %s227 = scalar_lea.sflag [#allocation4], %s226
        %s228 = sand.u32 %s122, 1
        %s229 = smul.addr %s228, 4
        %s230 = scalar_lea.vmem [#allocation5], %s229
        %p231 = scmp.lt.s32.totalorder %s25, 1
        %s232 = scalar_select %p231, %s25, 1
        %s233 = smul.addr %s232, 2
        %s234 = scalar_lea.vmem %s1, %s233
        %p235 = scmp.lt.s32.totalorder %s25, 1
        %s236 = scalar_select %p235, %s25, 1
        %s237 = smul.addr %s236, 2
        %s238 = scalar_lea.vmem %s2, %s237
        %v239 = vld [vmem:[%s200] sm:$0xf]
        %v242 = vunpack.c.l.s4 1983009808
        %v243 = vunpack.c.0.s8 %v242
        %v244 = vlaneseq
        %v245 = vshrl.u32 %v244, 7
        %v246 = vsub.s32 %v243, %v245
        %v247 = vrot.slane %v239, %v246
        %v248 = vcombine.high %v247, %v247
        %vm251 = vcmask 1041408
        %v252 = vsel %vm251, %v247, 0.0
        %v253 = vsel %vm251, %v248, 0.0
        %v254 = vadd.f32 %v252, %v253
        %255 = vadd.xlane.f32.xlu0 %v254
        %v256 = vpop.xlane.xlu0 %255
        %v257 = vrot.slane %v256, 4
        %v258 = vadd.f32 %v256, %v257
        %v259 = vrot.slane %v258, 2
        %v260 = vadd.f32 %v258, %v259
        %v261 = vrot.slane %v260, 1
        %v262 = vadd.f32 %v260, %v261
        %s263 = vtos %v262
        %v264 = vmul.f32 %v239, %v239
        %v267 = vunpack.c.l.s4 1983009808
        %v268 = vunpack.c.0.s8 %v267
        %v269 = vlaneseq
        %v270 = vshrl.u32 %v269, 7
        %v271 = vsub.s32 %v268, %v270
        %v272 = vrot.slane %v264, %v271
        %v273 = vcombine.high %v272, %v272
        %v276 = vsel %vm251, %v272, 0.0
        %v277 = vsel %vm251, %v273, 0.0
        %v278 = vadd.f32 %v276, %v277
        %279 = vadd.xlane.f32.xlu0 %v278
        %v280 = vpop.xlane.xlu0 %279
        %v281 = vrot.slane %v280, 4
        %v282 = vadd.f32 %v280, %v281
        %v283 = vrot.slane %v282, 2
        %v284 = vadd.f32 %v282, %v283
        %v285 = vrot.slane %v284, 1
        %v286 = vadd.f32 %v284, %v285
        %s287 = vtos %v286
        %s288 = smul.f32 %s263, 0.001953125
        %s289 = smul.f32 %s287, 0.001953125
        %s290 = smul.f32 %s288, %s288
        %s291 = ssub.f32 %s289, %s290
        %s292 = smax.f32 %s291, 0.0
        %s293 = sadd.f32 %s292, 1e-05
        %v294 = vstv %s293
        %v295 = vrsqrt.pop %v294
        %s296 = vtos %v295
        %v297 = vld [vmem:[%s234] sm:$0x3]
        %v298 = vstv %s296
        %v299 = vmul.f32 %v297, %v298
        %v300 = vld [vmem:[%s238] sm:$0x3]
        %v301 = vstv %s288
        %v302 = vmul.f32 %v301, %v299
        %v303 = vsub.f32 %v300, %v302
        %305 = vset.pattern.permute.xlu0 0
        %306 = vperm.xlu0 %305, %v299
        %v307 = vpop.permute.xlu0 %306
        %v309 = vunpack.c.l.s4 269488144
        %v310 = vunpack.c.0.s8 %v309
        %v311 = vlaneseq
        %v312 = vshrl.u32 %v311, 7
        %v313 = vsub.s32 %v310, %v312
        %v314 = vrot.slane %v307, %v313
        %v316 = vmul.f32 %v239, %v314
        %318 = vset.pattern.permute.xlu0 0
        %319 = vperm.xlu0 %318, %v303
        %v320 = vpop.permute.xlu0 %319
        %v322 = vunpack.c.l.s4 269488144
        %v323 = vunpack.c.0.s8 %v322
        %v324 = vlaneseq
        %v325 = vshrl.u32 %v324, 7
        %v326 = vsub.s32 %v323, %v325
        %v327 = vrot.slane %v320, %v326
        %v329 = vadd.f32 %v316, %v327
        %330 = vst [vmem:[%s230] sm:$0xf] %v329
        %s331 = sand.u32 %s122, 1
        %s332 = scalar_lea.sflag [#allocation4], %s331
        %s333 = sand.u32 %s122, 1
        %s334 = smul.addr %s333, 4
        %s335 = scalar_lea.vmem [#allocation5], %s334
        // Predicated region
        $region37: #{tpu_custom_call.1} parent=31 // pred_check
          %p336 = pneg %p132
        $region38: #{tpu_custom_call.1} parent=31 // pred_check_branch
          %338 = sbr.rel (%p336) target = $region40
        $region39: #{tpu_custom_call.1} parent=31 // pred_region
          %s340 = ssub.s32 64, 64
          %341 = vsyncadd %s332, %s340
          %s342 = smul.addr %s25, 2
          %s343 = smul.addr %s24, 4
          %s344 = sadd.s32 %s342, %s343
          %s345 = smul.addr %s344, 32
          %s346 = scalar_lea.hbm %s3, %s345
          %s348 = sshll.u32 %s335, 4
          %s349 = int_to_ptr.vmem [resolvable:$true] %s348
          %351 = dma.vmem_to_hbm [thread:$0]  %s349, 64, %s346, %s332
        $region40: #{tpu_custom_call.1} parent=31 // pred_fallthru
          _
      $region32: #{tpu_custom_call.1} parent=5 // pred_fallthru
        _
      %p352 = scmp.le.s32.totalorder 2, %s15
      // Predicated region
      $region41: #{tpu_custom_call.1} parent=5 // pred_check
        %p353 = pneg %p352
      $region42: #{tpu_custom_call.1} parent=5 // pred_check_branch
        %355 = sbr.rel (%p353) target = $region44
      $region43: #{tpu_custom_call.1} parent=5 // pred_region
        %s356 = ssub.s32 %s15, 2
        // Predicated region
        $region45: #{tpu_custom_call.1} parent=43 // pred_check
          %p357 = pneg %p138
        $region46: #{tpu_custom_call.1} parent=43 // pred_check_branch
          %359 = sbr.rel (%p357) target = $region48
        $region47: #{tpu_custom_call.1} parent=43 // pred_region
          %s360 = sand.u32 %s123, 1
          %s361 = scalar_lea.sflag [#allocation4], %s360
          %s362 = sand.u32 %s123, 1
          %s363 = smul.addr %s362, 4
          %s364 = scalar_lea.vmem [#allocation5], %s363
          %365 = dma.done %s361, 64
        $region48: #{tpu_custom_call.1} parent=43 // pred_fallthru
          _
      $region44: #{tpu_custom_call.1} parent=5 // pred_fallthru
        _
    $region6: #{tpu_custom_call.1} parent=1 // loop_footer
      %s19 = sadd.s32 1, %s15
    $region7: #{tpu_custom_call.1} parent=1 // loop_footer_branch
      %14 = sbr.rel target = $region3
    $region8: #{tpu_custom_call.1} parent=1 // loop_exit
      _
    %366 = vsyncpa [#allocation3], 1
    %s367 = scalar_lea.sflag [#allocation3], 1
    %368 = vsyncpa %s367, 1
    %369 = vsyncpa [#allocation4], 1
    %s370 = scalar_lea.sflag [#allocation4], 1
    %371 = vsyncpa %s370, 1

</llo_original>
